<compile_context>
chip_gen: v7x
topology: tpu7x:2x2x1
jax: 0.10.0
libtpu: 0.0.40
codegen_flags: <defaults>
</compile_context>

<pallas_src>
import functools
import numpy as np
import jax
import jax.numpy as jnp
from jax.experimental import pallas as pl
from jax.experimental.pallas import tpu as pltpu


# ----------------------------- tiling helpers -------------------------------

_VMEM_LIMIT = 32 * 1024 * 1024

_PARALLEL1 = pltpu.CompilerParams(dimension_semantics=("parallel",),
                                  vmem_limit_bytes=_VMEM_LIMIT)
_PARALLEL3 = pltpu.CompilerParams(
    dimension_semantics=("parallel", "parallel", "arbitrary"),
    vmem_limit_bytes=_VMEM_LIMIT)


def _pick_tile(dim, cap, mult):
    """Largest tile <= cap that divides `dim` and is a multiple of `mult`,
    otherwise the full dim (full-extent blocks are always legal)."""
    if dim <= cap:
        return dim
    t = (cap // mult) * mult
    while t >= mult:
        if dim % t == 0:
            return t
        t -= mult
    return dim


# ----------------------------- Pallas kernels -------------------------------

def _linear_kernel(x_ref, w_ref, b_ref, o_ref, acc_ref, *, act):
    @pl.when(pl.program_id(2) == 0)
    def _():
        acc_ref[...] = jnp.zeros_like(acc_ref)

    acc_ref[...] += jnp.dot(x_ref[...], w_ref[...],
                            preferred_element_type=jnp.float32)

    @pl.when(pl.program_id(2) == pl.num_programs(2) - 1)
    def _():
        y = acc_ref[...] + b_ref[...]
        if act == "silu":
            y = y * jax.nn.sigmoid(y)
        o_ref[...] = y.astype(o_ref.dtype)


def linear_tiled(x, w, b=None, act=None, out_dtype=jnp.bfloat16):
    """y = act(x @ w + b) — bf16 MXU matmul, f32 accumulator, tiled (M, N, K) grid."""
    M, K = x.shape
    N = w.shape[1]
    if b is None:
        b = jnp.zeros((N,), jnp.float32)
    tm = _pick_tile(M, 512, 16)          # bf16 packs 16 rows / sublane group
    tn = _pick_tile(N, 256, 128)
    tk = _pick_tile(K, 512, 128)
    grid = (M // tm, N // tn, K // tk)
    return pl.pallas_call(
        functools.partial(_linear_kernel, act=act),
        out_shape=jax.ShapeDtypeStruct((M, N), out_dtype),
        grid=grid,
        in_specs=[pl.BlockSpec((tm, tk), lambda i, j, k: (i, k)),
                  pl.BlockSpec((tk, tn), lambda i, j, k: (k, j)),
                  pl.BlockSpec((1, tn), lambda i, j, k: (0, j))],
        out_specs=pl.BlockSpec((tm, tn), lambda i, j, k: (i, j)),
        scratch_shapes=[pltpu.VMEM((tm, tn), jnp.float32)],
        compiler_params=_PARALLEL3,
    )(x.astype(jnp.bfloat16), w.astype(jnp.bfloat16),
      b.reshape(1, N).astype(jnp.float32))


def _linear_norm_kernel(x_ref, w_ref, b_ref, nw_ref, o_ref, *, eps):
    y = jnp.dot(x_ref[...], w_ref[...], preferred_element_type=jnp.float32)
    y = y + b_ref[...]
    ms = jnp.mean(y * y, axis=-1, keepdims=True)
    o_ref[...] = (y * jax.lax.rsqrt(ms + eps) * nw_ref[...]).astype(o_ref.dtype)


def linear_norm(x, w, b, norm_w, eps=1e-6):
    """rmsnorm(x @ w + b) — matmul with fused post-RMSNorm epilogue, M-tiled."""
    M, K = x.shape
    N = w.shape[1]
    if b is None:
        b = jnp.zeros((N,), jnp.float32)
    tm = _pick_tile(M, 256, 16)
    return pl.pallas_call(
        functools.partial(_linear_norm_kernel, eps=eps),
        out_shape=jax.ShapeDtypeStruct((M, N), jnp.bfloat16),
        grid=(M // tm,),
        in_specs=[pl.BlockSpec((tm, K), lambda i: (i, 0)),
                  pl.BlockSpec((K, N), lambda i: (0, 0)),
                  pl.BlockSpec((1, N), lambda i: (0, 0)),
                  pl.BlockSpec((1, N), lambda i: (0, 0))],
        out_specs=pl.BlockSpec((tm, N), lambda i: (i, 0)),
        compiler_params=_PARALLEL1,
    )(x.astype(jnp.bfloat16), w.astype(jnp.bfloat16),
      b.reshape(1, N).astype(jnp.float32), norm_w.reshape(1, N).astype(jnp.float32))


def _norm_linear_kernel(x_ref, nw_ref, w_ref, b_ref, o_ref, *, eps):
    x = x_ref[...].astype(jnp.float32)
    ms = jnp.mean(x * x, axis=-1, keepdims=True)
    xn = (x * jax.lax.rsqrt(ms + eps) * nw_ref[...]).astype(jnp.bfloat16)
    y = jnp.dot(xn, w_ref[...], preferred_element_type=jnp.float32) + b_ref[...]
    o_ref[...] = y.astype(o_ref.dtype)


def norm_linear(x, norm_w, w, b, eps=1e-6):
    """(rmsnorm(x)) @ w + b — pre-norm fused into the matmul, M-tiled."""
    M, K = x.shape
    N = w.shape[1]
    tm = _pick_tile(M, 256, 16)
    return pl.pallas_call(
        functools.partial(_norm_linear_kernel, eps=eps),
        out_shape=jax.ShapeDtypeStruct((M, N), jnp.bfloat16),
        grid=(M // tm,),
        in_specs=[pl.BlockSpec((tm, K), lambda i: (i, 0)),
                  pl.BlockSpec((1, K), lambda i: (0, 0)),
                  pl.BlockSpec((K, N), lambda i: (0, 0)),
                  pl.BlockSpec((1, N), lambda i: (0, 0))],
        out_specs=pl.BlockSpec((tm, N), lambda i: (i, 0)),
        compiler_params=_PARALLEL1,
    )(x.astype(jnp.bfloat16), norm_w.reshape(1, K).astype(jnp.float32),
      w.astype(jnp.bfloat16), b.reshape(1, N).astype(jnp.float32))


def _linear_residual_kernel(x_ref, w_ref, b_ref, r_ref, o_ref):
    y = jnp.dot(x_ref[...], w_ref[...], preferred_element_type=jnp.float32)
    y = y + b_ref[...] + r_ref[...].astype(jnp.float32)
    o_ref[...] = y.astype(o_ref.dtype)


def linear_residual(x, w, b, res):
    """x @ w + b + res — matmul with fused residual add (residual aliased to output)."""
    M, K = x.shape
    N = w.shape[1]
    tm = _pick_tile(M, 256, 16)
    return pl.pallas_call(
        _linear_residual_kernel,
        out_shape=jax.ShapeDtypeStruct((M, N), jnp.bfloat16),
        grid=(M // tm,),
        in_specs=[pl.BlockSpec((tm, K), lambda i: (i, 0)),
                  pl.BlockSpec((K, N), lambda i: (0, 0)),
                  pl.BlockSpec((1, N), lambda i: (0, 0)),
                  pl.BlockSpec((tm, N), lambda i: (i, 0))],
        out_specs=pl.BlockSpec((tm, N), lambda i: (i, 0)),
        input_output_aliases={3: 0},
        compiler_params=_PARALLEL1,
    )(x.astype(jnp.bfloat16), w.astype(jnp.bfloat16),
      b.reshape(1, N).astype(jnp.float32), res.astype(jnp.bfloat16))


def _mlp_kernel(x_ref, w1_ref, b1_ref, w2_ref, b2_ref, nw_ref, o_ref, *, eps, out_act):
    x = x_ref[...]                                               # (tm, C) bf16
    h = jnp.dot(x, w1_ref[...], preferred_element_type=jnp.float32) + b1_ref[...]
    # TODO(synk): torch nn.GELU is exact erf; tanh-approx GELU used on TPU (Mosaic-safe).
    h = jax.nn.gelu(h, approximate=True)
    y = jnp.dot(h.astype(jnp.bfloat16), w2_ref[...],
                preferred_element_type=jnp.float32) + b2_ref[...]
    ms = jnp.mean(y * y, axis=-1, keepdims=True)
    y = y * jax.lax.rsqrt(ms + eps) * nw_ref[...]
    out = x.astype(jnp.float32) + y
    if out_act == "silu":
        out = out * jax.nn.sigmoid(out)
    o_ref[...] = out.astype(o_ref.dtype)


def mlp_block(x, w1, b1, w2, b2, norm_w, eps=1e-6, out_act=None):
    """out = act(x + rmsnorm(fc2(gelu(fc1(x))))) — fully fused per M-tile
    (hidden stays on-chip); residual input aliased to the output buffer."""
    M, C = x.shape
    Hd = w1.shape[1]
    tm = _pick_tile(M, 256, 16)
    return pl.pallas_call(
        functools.partial(_mlp_kernel, eps=eps, out_act=out_act),
        out_shape=jax.ShapeDtypeStruct((M, C), jnp.bfloat16),
        grid=(M // tm,),
        in_specs=[pl.BlockSpec((tm, C), lambda i: (i, 0)),
                  pl.BlockSpec((C, Hd), lambda i: (0, 0)),
                  pl.BlockSpec((1, Hd), lambda i: (0, 0)),
                  pl.BlockSpec((Hd, C), lambda i: (0, 0)),
                  pl.BlockSpec((1, C), lambda i: (0, 0)),
                  pl.BlockSpec((1, C), lambda i: (0, 0))],
        out_specs=pl.BlockSpec((tm, C), lambda i: (i, 0)),
        input_output_aliases={0: 0},
        compiler_params=_PARALLEL1,
    )(x.astype(jnp.bfloat16), w1.astype(jnp.bfloat16),
      b1.reshape(1, Hd).astype(jnp.float32), w2.astype(jnp.bfloat16),
      b2.reshape(1, C).astype(jnp.float32), norm_w.reshape(1, C).astype(jnp.float32))


def _mha_kernel(*refs, num_heads, head_dim, cosine, has_bias, sm_scale):
    idx = 0
    qkv_ref = refs[idx]; idx += 1
    bias_ref = None
    scale_ref = None
    if has_bias:
        bias_ref = refs[idx]; idx += 1
    if cosine:
        scale_ref = refs[idx]; idx += 1
    o_ref = refs[idx]

    H, hd = num_heads, head_dim
    C = H * hd
    qkv = qkv_ref[...]                                           # (G, N, 3C) bf16
    bias_all = bias_ref[...] if has_bias else None               # (G or 1, H, N, N) f32

    for h in range(H):
        q = qkv[:, :, h * hd:(h + 1) * hd].astype(jnp.float32)          # (G, N, hd)
        k = qkv[:, :, C + h * hd:C + (h + 1) * hd].astype(jnp.float32)  # (G, N, hd)
        v = qkv[:, :, 2 * C + h * hd:2 * C + (h + 1) * hd]              # (G, N, hd) bf16
        if cosine:
            # Swin-V2 cosine attention: L2-normalise q/k; learned per-head scale is
            # applied to the f32 logits after the matmul (better numerics than
            # scaling bf16 q).
            q = q * jax.lax.rsqrt(jnp.maximum(jnp.sum(q * q, -1, keepdims=True), 1e-24))
            k = k * jax.lax.rsqrt(jnp.maximum(jnp.sum(k * k, -1, keepdims=True), 1e-24))
        logits = jax.lax.dot_general(
            q.astype(jnp.bfloat16), k.astype(jnp.bfloat16),
            dimension_numbers=(((2,), (2,)), ((0,), (0,))),
            preferred_element_type=jnp.float32)                  # (G, N, N)
        if cosine:
            logits = logits * scale_ref[h]                       # scalar read from SMEM
        else:
            logits = logits * sm_scale
        if has_bias:
            logits = logits + bias_all[:, h]                     # (G or 1, N, N) bcast
        m = jnp.max(logits, axis=-1, keepdims=True)
        p = jnp.exp(logits - m)
        denom = jnp.sum(p, axis=-1, keepdims=True)
        out_h = jax.lax.dot_general(
            p.astype(jnp.bfloat16), v,
            dimension_numbers=(((2,), (1,)), ((0,), (0,))),
            preferred_element_type=jnp.float32)                  # (G, N, hd)
        out_h = out_h / denom
        o_ref[:, :, h * hd:(h + 1) * hd] = out_h.astype(o_ref.dtype)


def mha_attention(qkv, num_heads, *, bias=None, scale_vec=None, cosine=False,
                  sm_scale=1.0):
    """qkv: (NB, N, 3C) lane-dense packed projections ([q | k | v] per token).
    bias: (nW, H, N, N) or (1, H, N, N) or None.  Returns (NB, N, C) bf16.
    Processes G windows/rows (all heads) per grid step; the small bias table is
    blocked through the index_map (resident when constant)."""
    NB, N, C3 = qkv.shape
    C = C3 // 3
    H = num_heads
    hd = C // H
    has_bias = bias is not None
    nb = bias.shape[0] if has_bias else 1

    group_cap = max(1, min(32, 512 // max(N, 1)))
    G = 1
    if has_bias and nb > 1:
        # group windows of one image together: G must divide nW (bias period) and NB
        for cand in range(min(nb, group_cap, NB), 0, -1):
            if nb % cand == 0 and NB % cand == 0:
                G = cand
                break
    else:
        for cand in range(min(group_cap, NB), 0, -1):
            if NB % cand == 0:
                G = cand
                break
    grid = (NB // G,)

    in_specs = [pl.BlockSpec((G, N, C3), lambda i: (i, 0, 0))]
    args = [qkv.astype(jnp.bfloat16)]
    if has_bias:
        if nb > 1:
            n_bias_blocks = nb // G
            in_specs.append(pl.BlockSpec(
                (G, H, N, N), lambda i: (i % n_bias_blocks, 0, 0, 0)))
        else:
            in_specs.append(pl.BlockSpec((1, H, N, N), lambda i: (0, 0, 0, 0)))
        args.append(bias.astype(jnp.float32))
    if cosine:
        in_specs.append(pl.BlockSpec(memory_space=pltpu.MemorySpace.SMEM))
        args.append(scale_vec.reshape(H).astype(jnp.float32))

    return pl.pallas_call(
        functools.partial(_mha_kernel, num_heads=H, head_dim=hd, cosine=cosine,
                          has_bias=has_bias, sm_scale=sm_scale),
        out_shape=jax.ShapeDtypeStruct((NB, N, C), jnp.bfloat16),
        grid=grid,
        in_specs=in_specs,
        out_specs=pl.BlockSpec((G, N, C), lambda i: (i, 0, 0)),
        compiler_params=_PARALLEL1,
    )(*args)


# ------------------------------- glue helpers -------------------------------

def window_partition(x, ws):
    B, H, W, C = x.shape
    x = x.reshape(B, H // ws, ws, W // ws, ws, C)
    return x.transpose(0, 1, 3, 2, 4, 5).reshape(-1, ws * ws, C)


def window_reverse(wins, ws, H, W, B):
    C = wins.shape[-1]
    x = wins.reshape(B, H // ws, W // ws, ws, ws, C)
    return x.transpose(0, 1, 3, 2, 4, 5).reshape(B, H, W, C)


def relative_coords_table(ws, pretrained_ws=0):
    rh = np.arange(-(ws - 1), ws, dtype=np.float32)
    rw = np.arange(-(ws - 1), ws, dtype=np.float32)
    t = np.stack(np.meshgrid(rh, rw, indexing="ij"), axis=-1)       # (2w-1, 2w-1, 2)
    denom = (pretrained_ws - 1) if pretrained_ws > 0 else max(ws - 1, 1)
    t = t / denom
    t = t * 8.0
    t = np.sign(t) * np.log2(np.abs(t) + 1.0) / np.log2(8.0)
    return t.reshape(-1, 2).astype(np.float32)                      # ((2w-1)^2, 2)


def relative_position_index(ws):
    coords = np.stack(np.meshgrid(np.arange(ws), np.arange(ws), indexing="ij"))
    cf = coords.reshape(2, -1)
    rel = (cf[:, :, None] - cf[:, None, :]).transpose(1, 2, 0).astype(np.int32)
    rel[..., 0] += ws - 1
    rel[..., 1] += ws - 1
    rel[..., 0] *= 2 * ws - 1
    return rel.sum(-1)                                              # (N, N)


def compute_attn_mask(H, W, ws, ss):
    img_mask = np.zeros((1, H, W, 1), np.float32)
    cnt = 0
    for h in (slice(0, -ws), slice(-ws, -ss), slice(-ss, None)):
        for w in (slice(0, -ws), slice(-ws, -ss), slice(-ss, None)):
            img_mask[:, h, w, :] = cnt
            cnt += 1
    mw = img_mask.reshape(1, H // ws, ws, W // ws, ws, 1)
    mw = mw.transpose(0, 1, 3, 2, 4, 5).reshape(-1, ws * ws)
    diff = mw[:, None, :] - mw[:, :, None]
    return np.where(diff != 0, -100.0, 0.0).astype(np.float32)      # (nW, N, N)


# ------------------------------ module forward ------------------------------

def patch_embed(x, p, patch, embed_dim):
    # Conv2d(in, embed_dim, k=patch, s=patch) as a matmul, with fused RMSNorm.
    B, C, H, W = x.shape
    ph, pw = H // patch, W // patch
    xp = x.reshape(B, C, ph, patch, pw, patch)
    xp = xp.transpose(0, 2, 4, 1, 3, 5).reshape(B * ph * pw, C * patch * patch)
    y = linear_norm(xp, p["proj_w"], p["proj_b"], p["norm_w"])
    return y.reshape(B, ph * pw, embed_dim)


def window_attention(x_windows, p, num_heads, mask, norm1_w):
    # Swin-V2 cosine window attention with continuous relative position bias.
    # Output projection is fused with the block's post-norm (norm1); RMSNorm is
    # per-token so it commutes with window_reverse/roll done by the caller.
    nWB, N, C = x_windows.shape
    qkv_bias = jnp.concatenate([p["q_bias"], jnp.zeros_like(p["q_bias"]), p["v_bias"]])
    qkv = linear_tiled(x_windows.reshape(-1, C), p["qkv_w"], qkv_bias)   # (nWB*N, 3C)
    qkv = qkv.reshape(nWB, N, 3 * C)                                     # lane-dense

    # continuous position bias MLP (tiny; computed in glue, fed to the kernel)
    h1 = jax.nn.relu(jnp.asarray(p["cpb_table"]) @ p["cpb_w1"] + p["cpb_b1"])
    tbl = h1 @ p["cpb_w2"]                                               # ((2w-1)^2, H)
    idx = jnp.asarray(p["rel_index"].reshape(-1))
    rel_bias = tbl[idx].reshape(N, N, num_heads).transpose(2, 0, 1)
    rel_bias = 16.0 * jax.nn.sigmoid(rel_bias)                           # (H, N, N)
    if mask is not None:
        bias = rel_bias[None] + jnp.asarray(mask)[:, None]               # (nW, H, N, N)
    else:
        bias = rel_bias[None]                                            # (1, H, N, N)

    scale = jnp.exp(jnp.minimum(p["logit_scale"], np.log(100.0))).reshape(num_heads)
    attn = mha_attention(qkv, num_heads, bias=bias, scale_vec=scale, cosine=True)
    out = linear_norm(attn.reshape(-1, C), p["proj_w"], p["proj_b"], norm1_w)
    return out.reshape(nWB, N, C)


def swin_block(x, p, resolution, num_heads, out_act=None):
    # Swin-V2 post-norm residual block (drop_path is identity at inference).
    H, W = resolution
    B, L, C = x.shape
    ws, ss = p["ws"], p["ss"]
    shortcut = x
    xh = x.reshape(B, H, W, C)
    if ss > 0:
        xh = jnp.roll(xh, shift=(-ss, -ss), axis=(1, 2))
    x_windows = window_partition(xh, ws)
    attn_normed = window_attention(x_windows, p["attn"], num_heads,
                                   p["attn_mask"], p["norm1_w"])
    xh = window_reverse(attn_normed, ws, H, W, B)
    if ss > 0:
        xh = jnp.roll(xh, shift=(ss, ss), axis=(1, 2))
    x = shortcut + xh.reshape(B, L, C)                               # residual (glue)
    y = mlp_block(x.reshape(-1, C), p["fc1_w"], p["fc1_b"],
                  p["fc2_w"], p["fc2_b"], p["norm2_w"], out_act=out_act)
    return y.reshape(B, L, C)


def patch_merging(x, p, resolution):
    H, W = resolution
    B, L, C = x.shape
    xh = x.reshape(B, H, W, C)
    x0 = xh[:, 0::2, 0::2]
    x1 = xh[:, 1::2, 0::2]
    x2 = xh[:, 0::2, 1::2]
    x3 = xh[:, 1::2, 1::2]
    xc = jnp.concatenate([x0, x1, x2, x3], axis=-1).reshape(B, -1, 4 * C)
    y = linear_norm(xc.reshape(-1, 4 * C), p["red_w"], None, p["norm_w"])
    return y.reshape(B, (H // 2) * (W // 2), 2 * C)


def basic_layer(x, p, resolution, num_heads, final_act=None):
    nblk = len(p["blocks"])
    for bi, bp in enumerate(p["blocks"]):
        act = final_act if (bi == nblk - 1 and "downsample" not in p) else None
        x = swin_block(x, bp, resolution, num_heads, out_act=act)
    if "downsample" in p:
        x = patch_merging(x, p["downsample"], resolution)
    return x


def global_attention(x, p, num_heads):
    # TODO(synk): exact `Attention` class source not provided; implemented as
    # pre-norm residual multi-head self-attention.
    B, L, C = x.shape
    hd = C // num_heads
    qkv = norm_linear(x.reshape(-1, C), p["norm_w"], p["qkv_w"], p["qkv_b"])
    qkv = qkv.reshape(B, L, 3 * C)
    o = mha_attention(qkv, num_heads, sm_scale=hd ** -0.5)           # (B, L, C)
    o = linear_residual(o.reshape(-1, C), p["proj_w"], p["proj_b"], x.reshape(-1, C))
    return o.reshape(B, L, C)


def attention_pool1d(x, p, num_heads):
    # CLIP-style AttentionPool1d, channel_first=False: x is (B, L, C).
    B, L, C = x.shape
    mean = jnp.mean(x.astype(jnp.float32), axis=1, keepdims=True)
    xx = jnp.concatenate([mean, x.astype(jnp.float32)], axis=1) + p["pos_emb"][None]
    xx = xx.astype(jnp.bfloat16)                                     # (B, L+1, C)
    hd = C // num_heads
    Lk = L + 1
    qkv = linear_tiled(xx.reshape(-1, C), p["qkv_w"], p["qkv_b"])    # (B*Lk, 3C)
    qkv = qkv.reshape(B, Lk, 3 * C)
    o = mha_attention(qkv, num_heads, sm_scale=hd ** -0.5)           # (B, Lk, C)
    o = o[:, 0, :]                                                   # query = mean token
    return linear_tiled(o, p["c_w"], p["c_b"])                       # (B, output_dim)


def swin_diffusion_encoder(x, params, cfg):
    x = patch_embed(x, params["patch_embed"], cfg["patch_size"], cfg["embed_dim"])
    if cfg["ape"]:
        x = (x.astype(jnp.float32) + params["absolute_pos_embed"]).astype(jnp.bfloat16)
    else:
        x = x.astype(jnp.bfloat16)
    # pos_drop / latent Dropout / DropPath are identity at inference
    res = cfg["patches_resolution"]
    x = basic_layer(x, params["init_layer"], res, cfg["num_heads"][0])
    for i in range(cfg["num_layers"]):
        r = (res[0] // 2 ** i, res[1] // 2 ** i)
        x = basic_layer(x, params["encode_layers"][i], r, cfg["num_heads"][i])
    fh_res = (res[0] // 2 ** cfg["num_layers"], res[1] // 2 ** cfg["num_layers"])
    last = cfg["num_layers"] - 1
    x = basic_layer(x, params["mid_layer_1"], fh_res, cfg["num_heads"][last])
    x = global_attention(x, params["mid_attn"], cfg["num_heads"][last])
    # the SiLU that starts pool_layer is fused as the epilogue of the last mid block
    x = basic_layer(x, params["mid_layer_2"], fh_res, cfg["num_heads"][last],
                    final_act="silu")
    # pool_layer: (SiLU) -> AttentionPool1d -> Linear -> Dropout -> SiLU -> Linear
    x = attention_pool1d(x, params["pool_attn"], num_heads=8)
    x = linear_tiled(x, params["pool_fc1_w"], params["pool_fc1_b"], act="silu")
    x = linear_tiled(x, params["pool_fc2_w"], params["pool_fc2_b"],
                     out_dtype=jnp.float32)
    return x                                                          # (B, emb_chans)


# ------------------------------- param init --------------------------------

class KeyGen:
    def __init__(self, seed):
        self._key = jax.random.PRNGKey(seed)

    def __call__(self):
        self._key, sub = jax.random.split(self._key)
        return sub


def normal_bf16(kg, shape, std=0.02):
    # trunc_normal_(std=0.02) approximated by a plain normal; stored bf16 once so
    # the per-forward cast in the wrappers is a no-op (saves a convert HBM pass).
    return (std * jax.random.normal(kg(), shape, jnp.float32)).astype(jnp.bfloat16)


def normal_f32(kg, shape, std=0.02):
    return std * jax.random.normal(kg(), shape, jnp.float32)


def init_attn(kg, dim, num_heads, ws, pretrained_ws=0):
    return {
        "qkv_w": normal_bf16(kg, (dim, 3 * dim)),
        "q_bias": jnp.zeros((dim,), jnp.float32),
        "v_bias": jnp.zeros((dim,), jnp.float32),
        "logit_scale": jnp.full((num_heads, 1, 1), np.log(10.0), jnp.float32),
        "cpb_w1": normal_f32(kg, (2, 512)),
        "cpb_b1": jnp.zeros((512,), jnp.float32),
        "cpb_w2": normal_f32(kg, (512, num_heads)),
        "cpb_table": relative_coords_table(ws, pretrained_ws),
        "rel_index": relative_position_index(ws),
        "proj_w": normal_bf16(kg, (dim, dim)),
        "proj_b": jnp.zeros((dim,), jnp.float32),
    }


def init_block(kg, dim, num_heads, window_size, resolution, shift, mlp_ratio):
    H, W = resolution
    ws, ss = window_size, shift
    if min(H, W) <= ws:
        ws, ss = min(H, W), 0
    hidden = int(dim * mlp_ratio)
    return {
        "ws": ws, "ss": ss,
        "attn": init_attn(kg, dim, num_heads, ws),
        "norm1_w": jnp.ones((dim,), jnp.float32),
        "norm2_w": jnp.ones((dim,), jnp.float32),
        "fc1_w": normal_bf16(kg, (dim, hidden)),
        "fc1_b": jnp.zeros((hidden,), jnp.float32),
        "fc2_w": normal_bf16(kg, (hidden, dim)),
        "fc2_b": jnp.zeros((dim,), jnp.float32),
        "attn_mask": compute_attn_mask(H, W, ws, ss) if ss > 0 else None,
    }


def init_basic_layer(kg, dim, resolution, depth, num_heads, window_size,
                     mlp_ratio, downsample):
    p = {"blocks": [init_block(kg, dim, num_heads, window_size, resolution,
                               0 if i % 2 == 0 else window_size // 2, mlp_ratio)
                    for i in range(depth)]}
    if downsample:
        p["downsample"] = {
            "red_w": normal_bf16(kg, (4 * dim, 2 * dim)),   # Linear(4C, 2C, bias=False)
            "norm_w": jnp.ones((2 * dim,), jnp.float32),
        }
    return p


def init_params(cfg, seed=0):
    kg = KeyGen(seed)
    embed_dim, patch, in_chans = cfg["embed_dim"], cfg["patch_size"], cfg["in_chans"]
    res = cfg["patches_resolution"]
    num_patches = res[0] * res[1]
    num_layers = cfg["num_layers"]
    feature_dim = embed_dim * 2 ** num_layers
    seq = (res[0] // 2 ** num_layers) * (res[1] // 2 ** num_layers)
    mlp_ratio = cfg["mlp_ratio"]

    fan_in = in_chans * patch * patch
    fan_out = embed_dim * patch * patch
    a = float(np.sqrt(6.0 / (fan_in + fan_out)))                     # xavier_uniform_
    conv_w = jax.random.uniform(kg(), (embed_dim, in_chans, patch, patch),
                                jnp.float32, -a, a)

    params = {
        "patch_embed": {
            "proj_w": conv_w.reshape(embed_dim, -1).T.astype(jnp.bfloat16),
            "proj_b": jnp.zeros((embed_dim,), jnp.float32),
            "norm_w": jnp.ones((embed_dim,), jnp.float32),
        },
        "absolute_pos_embed": normal_f32(kg, (1, num_patches, embed_dim)),
        "init_layer": init_basic_layer(kg, embed_dim, res, cfg["depths"][0],
                                       cfg["num_heads"][0], cfg["window_sizes"][0],
                                       mlp_ratio, downsample=False),
    }
    enc = []
    for i in range(num_layers):
        dim_i = embed_dim * 2 ** i
        r = (res[0] // 2 ** i, res[1] // 2 ** i)
        enc.append(init_basic_layer(kg, dim_i, r, cfg["depths"][i],
                                    cfg["num_heads"][i], cfg["window_sizes"][i],
                                    mlp_ratio, downsample=True))
    params["encode_layers"] = enc

    fh_res = (res[0] // 2 ** num_layers, res[1] // 2 ** num_layers)
    last = num_layers - 1
    params["mid_layer_1"] = init_basic_layer(kg, feature_dim, fh_res,
                                             cfg["depths"][last], cfg["num_heads"][last],
                                             cfg["window_sizes"][last], mlp_ratio, False)
    params["mid_attn"] = {
        "norm_w": jnp.ones((feature_dim,), jnp.float32),
        "qkv_w": normal_bf16(kg, (feature_dim, 3 * feature_dim)),
        "qkv_b": jnp.zeros((3 * feature_dim,), jnp.float32),
        "proj_w": normal_bf16(kg, (feature_dim, feature_dim)),
        "proj_b": jnp.zeros((feature_dim,), jnp.float32),
    }
    params["mid_layer_2"] = init_basic_layer(kg, feature_dim, fh_res,
                                             cfg["depths"][last], cfg["num_heads"][last],
                                             cfg["window_sizes"][last], mlp_ratio, False)
    out_dim = feature_dim * 2
    params["pool_attn"] = {
        "pos_emb": jax.random.normal(kg(), (seq + 1, feature_dim), jnp.float32)
                   / feature_dim ** 0.5,
        # q/k/v projections packed into one lane-dense (C, 3C) matmul
        "qkv_w": normal_bf16(kg, (feature_dim, 3 * feature_dim)),
        "qkv_b": jnp.zeros((3 * feature_dim,), jnp.float32),
        "c_w": normal_bf16(kg, (feature_dim, out_dim)),
        "c_b": jnp.zeros((out_dim,), jnp.float32),
    }
    params["pool_fc1_w"] = normal_bf16(kg, (out_dim, feature_dim))
    params["pool_fc1_b"] = jnp.zeros((feature_dim,), jnp.float32)
    params["pool_fc2_w"] = normal_bf16(kg, (feature_dim, cfg["emb_chans"]))
    params["pool_fc2_b"] = jnp.zeros((cfg["emb_chans"],), jnp.float32)
    return params


# ---------------------------------- main ------------------------------------

if __name__ == "__main__":
    # small but structurally faithful config (encoder ends at feature_hw = 2x2,
    # feature_dim = embed_dim * 2**num_layers = 128, pool heads = 8); stage 0 at
    # resolution 8x8 with window 4 exercises shifted windows + attention masks.
    cfg = dict(
        img_size=32, patch_size=4, in_chans=3, emb_chans=64,
        embed_dim=32, depths=[2, 2], num_heads=[2, 4],
        window_sizes=[4, 4], mlp_ratio=4.0, ape=True,
    )
    cfg["num_layers"] = len(cfg["depths"])
    cfg["patches_resolution"] = (cfg["img_size"] // cfg["patch_size"],
                                 cfg["img_size"] // cfg["patch_size"])

    params = init_params(cfg, seed=0)
    x = jax.random.normal(jax.random.PRNGKey(0),
                          (2, cfg["in_chans"], cfg["img_size"], cfg["img_size"]),
                          jnp.float32)

    out = swin_diffusion_encoder(x, params, cfg)
    out = jax.block_until_ready(out)
    assert out.shape == (2, cfg["emb_chans"]), out.shape
    assert bool(jnp.all(jnp.isfinite(out)))
    print("KERNEL_OK")
</pallas_src>

<mosaic_0001>
module attributes {stable_mosaic.version = 11 : i64} {
  func.func @_linear_norm_kernel(%arg0: i32, %arg1: memref<128x48xbf16, #tpu.memory_space<vmem>>, %arg2: memref<48x32xbf16, #tpu.memory_space<vmem>>, %arg3: memref<1x32xf32, #tpu.memory_space<vmem>>, %arg4: memref<1x32xf32, #tpu.memory_space<vmem>>, %arg5: memref<128x32xbf16, #tpu.memory_space<vmem>>) attributes {dimension_semantics = [#tpu.dimension_semantics<parallel>], iteration_bounds = array<i64: 1>, scalar_prefetch = 0 : i64, scratch_operands = 0 : i64, tpu.core_type = #tpu.core_type<tc>, window_params = [{transform_indices = @transform_0, window_bounds = array<i64: 128, 48>}, {pipeline_mode = #tpu.pipeline_mode<synchronous>, transform_indices = @transform_1, window_bounds = array<i64: 48, 32>}, {pipeline_mode = #tpu.pipeline_mode<synchronous>, transform_indices = @transform_2, window_bounds = array<i64: 1, 32>}, {pipeline_mode = #tpu.pipeline_mode<synchronous>, transform_indices = @transform_3, window_bounds = array<i64: 1, 32>}, {transform_indices = @transform_4, window_bounds = array<i64: 128, 32>}]} {
    %c0 = arith.constant 0 : index
    %c0_0 = arith.constant 0 : index
    %0 = vector.load %arg1[%c0, %c0_0] : memref<128x48xbf16, #tpu.memory_space<vmem>>, vector<128x48xbf16>
    %c0_1 = arith.constant 0 : index
    %c0_2 = arith.constant 0 : index
    %1 = vector.load %arg2[%c0_1, %c0_2] : memref<48x32xbf16, #tpu.memory_space<vmem>>, vector<48x32xbf16>
    %cst = arith.constant dense<0.000000e+00> : vector<128x32xf32>
    %2 = tpu.matmul %0, %1, %cst {dimension_numbers = #tpu.dot_dimension_numbers<[1], [0], [0], [1], [0, 0, 1, 1], [], []>} : vector<128x48xbf16>, vector<48x32xbf16>, vector<128x32xf32> -> vector<128x32xf32>
    %c0_3 = arith.constant 0 : index
    %c0_4 = arith.constant 0 : index
    %3 = vector.load %arg3[%c0_3, %c0_4] : memref<1x32xf32, #tpu.memory_space<vmem>>, vector<1x32xf32>
    %4 = vector.broadcast %3 : vector<1x32xf32> to vector<128x32xf32>
    %5 = arith.addf %2, %4 : vector<128x32xf32>
    %6 = arith.mulf %5, %5 : vector<128x32xf32>
    %cst_5 = arith.constant dense<0.000000e+00> : vector<128xf32>
    %7 = vector.multi_reduction <add>, %6, %cst_5 [1] : vector<128x32xf32> to vector<128xf32>
    %8 = vector.shape_cast %7 : vector<128xf32> to vector<128x1xf32>
    %cst_6 = arith.constant 3.200000e+01 : f32
    %9 = vector.broadcast %cst_6 : f32 to vector<128x1xf32>
    %10 = arith.divf %8, %9 : vector<128x1xf32>
    %cst_7 = arith.constant 9.99999997E-7 : f32
    %11 = vector.broadcast %cst_7 : f32 to vector<128x1xf32>
    %12 = arith.addf %10, %11 : vector<128x1xf32>
    %13 = math.rsqrt %12 : vector<128x1xf32>
    %14 = vector.broadcast %13 : vector<128x1xf32> to vector<128x32xf32>
    %15 = arith.mulf %5, %14 : vector<128x32xf32>
    %c0_8 = arith.constant 0 : index
    %c0_9 = arith.constant 0 : index
    %16 = vector.load %arg4[%c0_8, %c0_9] : memref<1x32xf32, #tpu.memory_space<vmem>>, vector<1x32xf32>
    %17 = vector.broadcast %16 : vector<1x32xf32> to vector<128x32xf32>
    %18 = arith.mulf %15, %17 : vector<128x32xf32>
    %19 = arith.truncf %18 : vector<128x32xf32> to vector<128x32xbf16>
    %c0_10 = arith.constant 0 : index
    %c0_11 = arith.constant 0 : index
    %20 = vector.load %arg5[%c0_10, %c0_11] : memref<128x32xbf16, #tpu.memory_space<vmem>>, vector<128x32xbf16>
    tpu.vector_store %arg5[%c0_10, %c0_11], %19 {strides = array<i32>} : memref<128x32xbf16, #tpu.memory_space<vmem>>, vector<128x32xbf16>,
    return
  }
  func.func @transform_0(%arg0: i32) -> (i32, i32) {
    %c0_i32 = arith.constant 0 : i32
    %c0_i32_0 = arith.constant 0 : i32
    return %arg0, %c0_i32 : i32, i32
  }
  func.func @transform_1(%arg0: i32) -> (i32, i32) {
    %c0_i32 = arith.constant 0 : i32
    %c0_i32_0 = arith.constant 0 : i32
    %c0_i32_1 = arith.constant 0 : i32
    return %c0_i32, %c0_i32_0 : i32, i32
  }
  func.func @transform_2(%arg0: i32) -> (i32, i32) {
    %c0_i32 = arith.constant 0 : i32
    %c0_i32_0 = arith.constant 0 : i32
    %c0_i32_1 = arith.constant 0 : i32
    return %c0_i32, %c0_i32_0 : i32, i32
  }
  func.func @transform_3(%arg0: i32) -> (i32, i32) {
    %c0_i32 = arith.constant 0 : i32
    %c0_i32_0 = arith.constant 0 : i32
    %c0_i32_1 = arith.constant 0 : i32
    return %c0_i32, %c0_i32_0 : i32, i32
  }
  func.func @transform_4(%arg0: i32) -> (i32, i32) {
    %c0_i32 = arith.constant 0 : i32
    %c0_i32_0 = arith.constant 0 : i32
    return %arg0, %c0_i32 : i32, i32
  }
}

</mosaic_0001>

<llo_original>
// kernel: tpu_custom_call.1
$region0: #{tpu_custom_call.1}
  #allocation0 [shape = 'u32[]', space=smem, size = 0x4, offset = 0x4, fixed_abs, tag = 'smem constant byte address 0x4 - core index']
  #allocation1 [shape = 'u32[144,128]{1,0:T(1,128)}', space=vmem, size = 0x12000, scoped, tag = 'internal scratch']
  %s0 = inlined_call_operand.vmem [shape: bf16[128,48], index: 0, kind: input, shape index: {}]
  %s1 = inlined_call_operand.vmem [shape: bf16[48,32], index: 1, kind: input, shape index: {}]
  %s2 = inlined_call_operand.vmem [shape: f32[1,32], index: 2, kind: input, shape index: {}]
  %s3 = inlined_call_operand.vmem [shape: f32[1,32], index: 3, kind: input, shape index: {}]
  %s4 = inlined_call_operand.vmem [shape: bf16[128,32], index: 4, kind: output, shape index: {}]
  %s5 = sld [smem:[#allocation0]]
  $region26: #{tpu_custom_call.1} parent=0
    _
  %s7 = ssub.s32 1, %s5
  %s8 = scalar_select 0, %s7, %s5
  // Predicated region
  $region2: #{tpu_custom_call.1} parent=0 // pred_check
    _
  $region3: #{tpu_custom_call.1} parent=0 // pred_check_branch
    %10 = sbr.rel (0) target = $region5
  $region4: #{tpu_custom_call.1} parent=0 // pred_region
    _
  $region5: #{tpu_custom_call.1} parent=0 // pred_fallthru
    _
  // Predicated region
  $region6: #{tpu_custom_call.1} parent=0 // pred_check
    _
  $region7: #{tpu_custom_call.1} parent=0 // pred_check_branch
    %12 = sbr.rel (0) target = $region9
  $region8: #{tpu_custom_call.1} parent=0 // pred_region
    _
  $region9: #{tpu_custom_call.1} parent=0 // pred_fallthru
    _
  // Predicated region
  $region10: #{tpu_custom_call.1} parent=0 // pred_check
    _
  $region11: #{tpu_custom_call.1} parent=0 // pred_check_branch
    %14 = sbr.rel (0) target = $region13
  $region12: #{tpu_custom_call.1} parent=0 // pred_region
    _
  $region13: #{tpu_custom_call.1} parent=0 // pred_fallthru
    _
  // Predicated region
  $region14: #{tpu_custom_call.1} parent=0 // pred_check
    _
  $region15: #{tpu_custom_call.1} parent=0 // pred_check_branch
    %16 = sbr.rel (0) target = $region17
  $region16: #{tpu_custom_call.1} parent=0 // pred_region
    _
  $region17: #{tpu_custom_call.1} parent=0 // pred_fallthru
    _
  %v18 = vld [vmem:[%s0] sm:$0xf]
  %v19 = vld [vmem:[%s0 + $0x4] sm:$0xf]
  %v20 = vld [vmem:[%s0 + $0x8] sm:$0xf]
  %v21 = vld [vmem:[%s0 + $0xc] sm:$0xf]
  %v22 = vld [vmem:[%s0 + $0x10] sm:$0xf]
  %v23 = vld [vmem:[%s0 + $0x14] sm:$0xf]
  %v24 = vld [vmem:[%s0 + $0x18] sm:$0xf]
  %v25 = vld [vmem:[%s0 + $0x1c] sm:$0xf]
  %v26 = vld [vmem:[%s0 + $0x20] sm:$0xf]
  %v27 = vld [vmem:[%s0 + $0x24] sm:$0xf]
  %v28 = vld [vmem:[%s0 + $0x28] sm:$0xf]
  %v29 = vld [vmem:[%s0 + $0x2c] sm:$0xf]
  %v30 = vld [vmem:[%s0 + $0x30] sm:$0xf]
  %v31 = vld [vmem:[%s0 + $0x34] sm:$0xf]
  %v32 = vld [vmem:[%s0 + $0x38] sm:$0xf]
  %v33 = vld [vmem:[%s0 + $0x3c] sm:$0xf]
  %v34 = vld [vmem:[%s1] sm:$0xf]
  %v35 = vld [vmem:[%s1 + $0x4] sm:$0xf]
  %v36 = vld [vmem:[%s1 + $0x8] sm:$0xf]
  %v37 = vld [vmem:[%s1 + $0xc] sm:$0xf]
  %v38 = vld [vmem:[%s1 + $0x10] sm:$0xf]
  %v39 = vld [vmem:[%s1 + $0x14] sm:$0xf]
  %v40 = vld [vmem:[%s2] sm:$0x1]
  %v42 = vlaneseq
  %v43 = vshrl.u32 %v42, 7
  %v44 = vsub.s32 0, %v43
  %v45 = vrot.slane %v40, %v44
  %v63 = vunpack.c.l.b16 %v18
  %v64 = vunpack.c.l.b16 %v19
  %v65 = vunpack.c.l.b16 %v20
  %v66 = vunpack.c.l.b16 %v21
  %v67 = vunpack.c.l.b16 %v22
  %v68 = vunpack.c.l.b16 %v23
  %v69 = vunpack.c.l.b16 %v24
  %v70 = vunpack.c.l.b16 %v25
  %v71 = vunpack.c.l.b16 %v26
  %v72 = vunpack.c.l.b16 %v27
  %v73 = vunpack.c.l.b16 %v28
  %v74 = vunpack.c.l.b16 %v29
  %v75 = vunpack.c.l.b16 %v30
  %v76 = vunpack.c.l.b16 %v31
  %v77 = vunpack.c.l.b16 %v32
  %v78 = vunpack.c.l.b16 %v33
  %v79 = vpack.c.b16 %v64, %v63
  %v80 = vpack.c.b16 %v66, %v65
  %v81 = vpack.c.b16 %v68, %v67
  %v82 = vpack.c.b16 %v70, %v69
  %v83 = vpack.c.b16 %v72, %v71
  %v84 = vpack.c.b16 %v74, %v73
  %v85 = vpack.c.b16 %v76, %v75
  %v86 = vpack.c.b16 %v78, %v77
  %v93 = vunpack.c.l.b16 %v34
  %v94 = vunpack.c.l.b16 %v35
  %v95 = vunpack.c.l.b16 %v36
  %v96 = vunpack.c.l.b16 %v37
  %v97 = vunpack.c.l.b16 %v38
  %v98 = vunpack.c.l.b16 %v39
  %v99 = vpack.c.b16 %v94, %v93
  %v100 = vpack.c.b16 %v96, %v95
  %v101 = vpack.c.b16 %v98, %v97
  %vm105 = vcmask 392192
  %v107 = vsel %vm105, %v79, 0
  %v110 = vsel %vm105, %v80, 0
  %v113 = vsel %vm105, %v81, 0
  %v116 = vsel %vm105, %v82, 0
  %v119 = vsel %vm105, %v83, 0
  %v122 = vsel %vm105, %v84, 0
  %v125 = vsel %vm105, %v85, 0
  %v128 = vsel %vm105, %v86, 0
  %130 = vmatprep.subr.bf16.mxu0 0
  %131 = vmatpush1.bf16.msra.mxu0 %v99
  %132 = vmatprep.subr.bf16.mxu0 0
  %133 = vmatpush1.bf16.msra.mxu0 %v100
  %134 = vmatprep.subr.bf16.mxu0 0
  %135 = vmatpush1.bf16.msra.mxu0 %v101
  %136 = vmatprep.subr.bf16.mxu0 0
  %137 = vmatpush1.bf16.msra.mxu0 0
  %138 = vmatprep.subr.bf16.mxu0 0
  %139 = vmatpush1.bf16.msra.mxu0 0
  %140 = vmatprep.subr.bf16.mxu0 0
  %141 = vmatpush1.bf16.msra.mxu0 0
  %142 = vmatprep.subr.bf16.mxu0 0
  %143 = vmatpush1.bf16.msra.mxu0 0
  %144 = vmatprep.subr.bf16.mxu0 0
  %145 = vmatpush1.bf16.msra.mxu0 0
  %146 = vmatprep.subr.bf16.mxu0 0
  %147 = vmatpush1.bf16.msra.mxu0 0
  %148 = vmatprep.subr.bf16.mxu0 0
  %149 = vmatpush1.bf16.msra.mxu0 0
  %150 = vmatprep.subr.bf16.mxu0 0
  %151 = vmatpush1.bf16.msra.mxu0 0
  %152 = vmatprep.subr.bf16.mxu0 0
  %153 = vmatpush1.bf16.msra.mxu0 0
  %154 = vmatprep.subr.bf16.mxu0 0
  %155 = vmatpush1.bf16.msra.mxu0 0
  %156 = vmatprep.subr.bf16.mxu0 0
  %157 = vmatpush1.bf16.msra.mxu0 0
  %158 = vmatprep.subr.bf16.mxu0 0
  %159 = vmatpush1.bf16.msra.mxu0 0
  %160 = vmatprep.subr.bf16.mxu0 0
  %161 = vmatpush1.bf16.msra.mxu0 0
  %162 = vmatprep.mubr.bf16.mxu0 0
  %163 = vmatmul.mubr.bf16.gmra.mrb[0].mxu0 %v107
  %v164 = vpop.f32.mrb[0].mxu0
  %v165 = vadd.f32 %v45, %v164
  %v166 = vpop.f32.mrb[0].mxu0
  %v167 = vpop.f32.mrb[0].mxu0
  %v168 = vadd.f32 %v45, %v167
  %v169 = vpop.f32.mrb[0].mxu0
  %170 = vmatprep.mubr.bf16.mxu0 0
  %171 = vmatmul.mubr.bf16.gmra.mrb[0].mxu0 %v110
  %v172 = vpop.f32.mrb[0].mxu0
  %v173 = vadd.f32 %v45, %v172
  %v174 = vpop.f32.mrb[0].mxu0
  %v175 = vpop.f32.mrb[0].mxu0
  %v176 = vadd.f32 %v45, %v175
  %v177 = vpop.f32.mrb[0].mxu0
  %178 = vmatprep.mubr.bf16.mxu0 0
  %179 = vmatmul.mubr.bf16.gmra.mrb[0].mxu0 %v113
  %v180 = vpop.f32.mrb[0].mxu0
  %v181 = vadd.f32 %v45, %v180
  %v182 = vpop.f32.mrb[0].mxu0
  %v183 = vpop.f32.mrb[0].mxu0
  %v184 = vadd.f32 %v45, %v183
  %v185 = vpop.f32.mrb[0].mxu0
  %186 = vmatprep.mubr.bf16.mxu0 0
  %187 = vmatmul.mubr.bf16.gmra.mrb[0].mxu0 %v116
  %v188 = vpop.f32.mrb[0].mxu0
  %v189 = vadd.f32 %v45, %v188
  %v190 = vpop.f32.mrb[0].mxu0
  %v191 = vpop.f32.mrb[0].mxu0
  %v192 = vadd.f32 %v45, %v191
  %v193 = vpop.f32.mrb[0].mxu0
  %194 = vmatprep.mubr.bf16.mxu0 0
  %195 = vmatmul.mubr.bf16.gmra.mrb[0].mxu0 %v119
  %v196 = vpop.f32.mrb[0].mxu0
  %v197 = vadd.f32 %v45, %v196
  %v198 = vpop.f32.mrb[0].mxu0
  %v199 = vpop.f32.mrb[0].mxu0
  %v200 = vadd.f32 %v45, %v199
  %v201 = vpop.f32.mrb[0].mxu0
  %202 = vmatprep.mubr.bf16.mxu0 0
  %203 = vmatmul.mubr.bf16.gmra.mrb[0].mxu0 %v122
  %v204 = vpop.f32.mrb[0].mxu0
  %v205 = vadd.f32 %v45, %v204
  %v206 = vpop.f32.mrb[0].mxu0
  %v207 = vpop.f32.mrb[0].mxu0
  %v208 = vadd.f32 %v45, %v207
  %v209 = vpop.f32.mrb[0].mxu0
  %210 = vmatprep.mubr.bf16.mxu0 0
  %211 = vmatmul.mubr.bf16.gmra.mrb[0].mxu0 %v125
  %v212 = vpop.f32.mrb[0].mxu0
  %v213 = vadd.f32 %v45, %v212
  %v214 = vpop.f32.mrb[0].mxu0
  %v215 = vpop.f32.mrb[0].mxu0
  %v216 = vadd.f32 %v45, %v215
  %v217 = vpop.f32.mrb[0].mxu0
  %218 = vmatprep.mubr.bf16.mxu0 0
  %219 = vmatmul.mubr.bf16.gmra.mrb[0].mxu0 %v128
  %v220 = vpop.f32.mrb[0].mxu0
  %v221 = vadd.f32 %v45, %v220
  %v222 = vpop.f32.mrb[0].mxu0
  %v223 = vpop.f32.mrb[0].mxu0
  %v224 = vadd.f32 %v45, %v223
  %v225 = vpop.f32.mrb[0].mxu0
  %226 = vdwg.mxu0
  %v227 = vmul.f32 %v165, %v165
  %v228 = vmul.f32 %v168, %v168
  %v229 = vmul.f32 %v173, %v173
  %v230 = vmul.f32 %v176, %v176
  %v231 = vmul.f32 %v181, %v181
  %v232 = vmul.f32 %v184, %v184
  %v233 = vmul.f32 %v189, %v189
  %v234 = vmul.f32 %v192, %v192
  %v235 = vmul.f32 %v197, %v197
  %v236 = vmul.f32 %v200, %v200
  %v237 = vmul.f32 %v205, %v205
  %v238 = vmul.f32 %v208, %v208
  %v239 = vmul.f32 %v213, %v213
  %v240 = vmul.f32 %v216, %v216
  %v241 = vmul.f32 %v221, %v221
  %v242 = vmul.f32 %v224, %v224
  %vm243 = vcmask 261120
  %v244 = vsel %vm243, %v227, 0.0
  %245 = vadd.xlane.f32.xlu0 %v244
  %v246 = vpop.xlane.xlu0 %245
  %v247 = vsel %vm243, %v228, 0.0
  %248 = vadd.xlane.f32.xlu0 %v247
  %v249 = vpop.xlane.xlu0 %248
  %v250 = vsel %vm243, %v229, 0.0
  %251 = vadd.xlane.f32.xlu0 %v250
  %v252 = vpop.xlane.xlu0 %251
  %v253 = vsel %vm243, %v230, 0.0
  %254 = vadd.xlane.f32.xlu0 %v253
  %v255 = vpop.xlane.xlu0 %254
  %v256 = vsel %vm243, %v231, 0.0
  %257 = vadd.xlane.f32.xlu0 %v256
  %v258 = vpop.xlane.xlu0 %257
  %v259 = vsel %vm243, %v232, 0.0
  %260 = vadd.xlane.f32.xlu0 %v259
  %v261 = vpop.xlane.xlu0 %260
  %v262 = vsel %vm243, %v233, 0.0
  %263 = vadd.xlane.f32.xlu0 %v262
  %v264 = vpop.xlane.xlu0 %263
  %v265 = vsel %vm243, %v234, 0.0
  %266 = vadd.xlane.f32.xlu0 %v265
  %v267 = vpop.xlane.xlu0 %266
  %v268 = vsel %vm243, %v235, 0.0
  %269 = vadd.xlane.f32.xlu0 %v268
  %v270 = vpop.xlane.xlu0 %269
  %v271 = vsel %vm243, %v236, 0.0
  %272 = vadd.xlane.f32.xlu0 %v271
  %v273 = vpop.xlane.xlu0 %272
  %v274 = vsel %vm243, %v237, 0.0
  %275 = vadd.xlane.f32.xlu0 %v274
  %v276 = vpop.xlane.xlu0 %275
  %v277 = vsel %vm243, %v238, 0.0
  %278 = vadd.xlane.f32.xlu0 %v277
  %v279 = vpop.xlane.xlu0 %278
  %v280 = vsel %vm243, %v239, 0.0
  %281 = vadd.xlane.f32.xlu0 %v280
  %v282 = vpop.xlane.xlu0 %281
  %v283 = vsel %vm243, %v240, 0.0
  %284 = vadd.xlane.f32.xlu0 %v283
  %v285 = vpop.xlane.xlu0 %284
  %v286 = vsel %vm243, %v241, 0.0
  %287 = vadd.xlane.f32.xlu0 %v286
  %v288 = vpop.xlane.xlu0 %287
  %v289 = vsel %vm243, %v242, 0.0
  %290 = vadd.xlane.f32.xlu0 %v289
  %v291 = vpop.xlane.xlu0 %290
  %v292 = vrcp.pop 32.0
  %v293 = vmul.f32 %v246, %v292
  %v294 = vmul.f32 %v249, %v292
  %v295 = vmul.f32 %v252, %v292
  %v296 = vmul.f32 %v255, %v292
  %v297 = vmul.f32 %v258, %v292
  %v298 = vmul.f32 %v261, %v292
  %v299 = vmul.f32 %v264, %v292
  %v300 = vmul.f32 %v267, %v292
  %v301 = vmul.f32 %v270, %v292
  %v302 = vmul.f32 %v273, %v292
  %v303 = vmul.f32 %v276, %v292
  %v304 = vmul.f32 %v279, %v292
  %v305 = vmul.f32 %v282, %v292
  %v306 = vmul.f32 %v285, %v292
  %v307 = vmul.f32 %v288, %v292
  %v308 = vmul.f32 %v291, %v292
  %v309 = vadd.f32 %v293, 1e-06
  %v310 = vadd.f32 %v294, 1e-06
  %v311 = vadd.f32 %v295, 1e-06
  %v312 = vadd.f32 %v296, 1e-06
  %v313 = vadd.f32 %v297, 1e-06
  %v314 = vadd.f32 %v298, 1e-06
  %v315 = vadd.f32 %v299, 1e-06
  %v316 = vadd.f32 %v300, 1e-06
  %v317 = vadd.f32 %v301, 1e-06
  %v318 = vadd.f32 %v302, 1e-06
  %v319 = vadd.f32 %v303, 1e-06
  %v320 = vadd.f32 %v304, 1e-06
  %v321 = vadd.f32 %v305, 1e-06
  %v322 = vadd.f32 %v306, 1e-06
  %v323 = vadd.f32 %v307, 1e-06
  %v324 = vadd.f32 %v308, 1e-06
  %v325 = vrsqrt.pop %v309
  %v326 = vrsqrt.pop %v310
  %v327 = vrsqrt.pop %v311
  %v328 = vrsqrt.pop %v312
  %v329 = vrsqrt.pop %v313
  %v330 = vrsqrt.pop %v314
  %v331 = vrsqrt.pop %v315
  %v332 = vrsqrt.pop %v316
  %v333 = vrsqrt.pop %v317
  %v334 = vrsqrt.pop %v318
  %v335 = vrsqrt.pop %v319
  %v336 = vrsqrt.pop %v320
  %v337 = vrsqrt.pop %v321
  %v338 = vrsqrt.pop %v322
  %v339 = vrsqrt.pop %v323
  %v340 = vrsqrt.pop %v324
  %v341 = vmul.f32 %v165, %v325
  %v342 = vmul.f32 %v168, %v326
  %v343 = vmul.f32 %v173, %v327
  %v344 = vmul.f32 %v176, %v328
  %v345 = vmul.f32 %v181, %v329
  %v346 = vmul.f32 %v184, %v330
  %v347 = vmul.f32 %v189, %v331
  %v348 = vmul.f32 %v192, %v332
  %v349 = vmul.f32 %v197, %v333
  %v350 = vmul.f32 %v200, %v334
  %v351 = vmul.f32 %v205, %v335
  %v352 = vmul.f32 %v208, %v336
  %v353 = vmul.f32 %v213, %v337
  %v354 = vmul.f32 %v216, %v338
  %v355 = vmul.f32 %v221, %v339
  %v356 = vmul.f32 %v224, %v340
  %v357 = vld [vmem:[%s3] sm:$0x1]
  %v359 = vlaneseq
  %v360 = vshrl.u32 %v359, 7
  %v361 = vsub.s32 0, %v360
  %v362 = vrot.slane %v357, %v361
  %v364 = vmul.f32 %v341, %v362
  %v365 = vmul.f32 %v342, %v362
  %v366 = vmul.f32 %v343, %v362
  %v367 = vmul.f32 %v344, %v362
  %v368 = vmul.f32 %v345, %v362
  %v369 = vmul.f32 %v346, %v362
  %v370 = vmul.f32 %v347, %v362
  %v371 = vmul.f32 %v348, %v362
  %v372 = vmul.f32 %v349, %v362
  %v373 = vmul.f32 %v350, %v362
  %v374 = vmul.f32 %v351, %v362
  %v375 = vmul.f32 %v352, %v362
  %v376 = vmul.f32 %v353, %v362
  %v377 = vmul.f32 %v354, %v362
  %v378 = vmul.f32 %v355, %v362
  %v379 = vmul.f32 %v356, %v362
  %v380 = vpack.c.bf16 %v365, %v364
  %v381 = vpack.c.bf16 %v367, %v366
  %v382 = vpack.c.bf16 %v369, %v368
  %v383 = vpack.c.bf16 %v371, %v370
  %v384 = vpack.c.bf16 %v373, %v372
  %v385 = vpack.c.bf16 %v375, %v374
  %v386 = vpack.c.bf16 %v377, %v376
  %v387 = vpack.c.bf16 %v379, %v378
  %v396 = vunpack.c.l.b16 %v380
  %v397 = vunpack.c.h.b16 %v380
  %v398 = vunpack.c.l.b16 %v381
  %v399 = vunpack.c.h.b16 %v381
  %v400 = vunpack.c.l.b16 %v382
  %v401 = vunpack.c.h.b16 %v382
  %v402 = vunpack.c.l.b16 %v383
  %v403 = vunpack.c.h.b16 %v383
  %v404 = vunpack.c.l.b16 %v384
  %v405 = vunpack.c.h.b16 %v384
  %v406 = vunpack.c.l.b16 %v385
  %v407 = vunpack.c.h.b16 %v385
  %v408 = vunpack.c.l.b16 %v386
  %v409 = vunpack.c.h.b16 %v386
  %v410 = vunpack.c.l.b16 %v387
  %v411 = vunpack.c.h.b16 %v387
  %v412 = vpack.c.b16 %v396, %v396
  %v413 = vpack.c.b16 %v397, %v397
  %v414 = vpack.c.b16 %v398, %v398
  %v415 = vpack.c.b16 %v399, %v399
  %v416 = vpack.c.b16 %v400, %v400
  %v417 = vpack.c.b16 %v401, %v401
  %v418 = vpack.c.b16 %v402, %v402
  %v419 = vpack.c.b16 %v403, %v403
  %v420 = vpack.c.b16 %v404, %v404
  %v421 = vpack.c.b16 %v405, %v405
  %v422 = vpack.c.b16 %v406, %v406
  %v423 = vpack.c.b16 %v407, %v407
  %v424 = vpack.c.b16 %v408, %v408
  %v425 = vpack.c.b16 %v409, %v409
  %v426 = vpack.c.b16 %v410, %v410
  %v427 = vpack.c.b16 %v411, %v411
  %vm444 = vcmask 257024
  %445 = vst.msk [vmem:[%s4] sm:$0xf] %vm444, %v412
  %446 = vst.msk [vmem:[%s4 + $0x4] sm:$0xf] %vm444, %v413
  %447 = vst.msk [vmem:[%s4 + $0x8] sm:$0xf] %vm444, %v414
  %448 = vst.msk [vmem:[%s4 + $0xc] sm:$0xf] %vm444, %v415
  %449 = vst.msk [vmem:[%s4 + $0x10] sm:$0xf] %vm444, %v416
  %450 = vst.msk [vmem:[%s4 + $0x14] sm:$0xf] %vm444, %v417
  %451 = vst.msk [vmem:[%s4 + $0x18] sm:$0xf] %vm444, %v418
  %452 = vst.msk [vmem:[%s4 + $0x1c] sm:$0xf] %vm444, %v419
  %453 = vst.msk [vmem:[%s4 + $0x20] sm:$0xf] %vm444, %v420
  %454 = vst.msk [vmem:[%s4 + $0x24] sm:$0xf] %vm444, %v421
  %455 = vst.msk [vmem:[%s4 + $0x28] sm:$0xf] %vm444, %v422
  %456 = vst.msk [vmem:[%s4 + $0x2c] sm:$0xf] %vm444, %v423
  %457 = vst.msk [vmem:[%s4 + $0x30] sm:$0xf] %vm444, %v424
  %458 = vst.msk [vmem:[%s4 + $0x34] sm:$0xf] %vm444, %v425
  %459 = vst.msk [vmem:[%s4 + $0x38] sm:$0xf] %vm444, %v426
  %460 = vst.msk [vmem:[%s4 + $0x3c] sm:$0xf] %vm444, %v427
  // Predicated region
  $region18: #{tpu_custom_call.1} parent=0 // pred_check
    _
  $region19: #{tpu_custom_call.1} parent=0 // pred_check_branch
    %462 = sbr.rel (0) target = $region21
  $region20: #{tpu_custom_call.1} parent=0 // pred_region
    _
  $region21: #{tpu_custom_call.1} parent=0 // pred_fallthru
    _
  // Predicated region
  $region22: #{tpu_custom_call.1} parent=0 // pred_check
    _
  $region23: #{tpu_custom_call.1} parent=0 // pred_check_branch
    %464 = sbr.rel (0) target = $region25
  $region24: #{tpu_custom_call.1} parent=0 // pred_region
    _
  $region25: #{tpu_custom_call.1} parent=0 // pred_fallthru
    _

</llo_original>
